<compile_context>
chip_gen: v7x
topology: tpu7x:2x2x1
jax: 0.10.0
libtpu: 0.0.40
codegen_flags: <defaults>
</compile_context>

<pallas_src>
import functools

import jax
import jax.numpy as jnp
from jax.experimental import pallas as pl
from jax.experimental.pallas import tpu as pltpu

HEAD_SIZES = (1, 18, 6, 4)        # out, out0, out1, out2
N_OUT = sum(HEAD_SIZES)           # 29
N_PAD = 128                       # lane-dense fused-head output width
NC_CHUNK = 512                    # hidden-dim chunk (multiple of 128)


def _round_up(x, m):
    return (x + m - 1) // m * m


def _nonlinear_multibin_kernel(x_ref, wh_ref, wot_ref, bo_ref, y_ref, *, chunks):
    # x_ref  : (TM, K_PAD)        f32   cols = [inp..., 1(bias), 0...]
    # wh_ref : (K_PAD, NC_PAD)    bf16  rows = [W_h..., b_h, 0...]
    # wot_ref: (NC_PAD, N_PAD)    bf16  K-major fused head weights (cols >=29 zero)
    # bo_ref : (1, N_PAD)         f32
    # y_ref  : (TM, N_PAD)        f32
    tm = x_ref.shape[0]
    x = x_ref[...].astype(jnp.bfloat16)                       # (TM, K_PAD)
    acc = jnp.broadcast_to(bo_ref[...], (tm, N_PAD))           # start from output bias
    # Static unroll over nc chunks: MXU hidden dot + MXU head dot per chunk,
    # with the LeakyReLU / bf16 cast (VPU) of one chunk overlapping the MXU
    # contraction of its neighbours.
    for c0, cs in chunks:
        h = jnp.dot(x, wh_ref[:, c0:c0 + cs],
                    preferred_element_type=jnp.float32)        # (TM, cs) f32, bias folded in
        h = jnp.where(h > 0, h, 0.01 * h).astype(jnp.bfloat16)  # LeakyReLU(0.01)
        acc = acc + jnp.dot(h, wot_ref[c0:c0 + cs, :],
                            preferred_element_type=jnp.float32)
    y_ref[...] = acc


@functools.partial(jax.jit, static_argnames=("block_rows",))
def nonlinear_multibin(inp, w_h, b_h, w_o, b_o, *, block_rows=1024):
    """inp: (B, in_nc); w_h: (in_nc, nc); b_h: (1, nc);
    w_o: (nc, 29) concatenated heads; b_o: (1, 29).
    Returns (out, out0, out1, out2)."""
    B, in_nc = inp.shape
    nc = w_h.shape[1]
    nc_pad = _round_up(nc, 128)
    k_pad = _round_up(in_nc + 1, 8)            # + bias column, sublane aligned

    # Row tiling: near-equal 8-aligned tiles (bounded padding waste on unlucky
    # batch sizes) and at least 2 grid steps for mid-size batches so the
    # "parallel" grid axis can shard across both v7x TensorCores.
    n_tiles = max(1, pl.cdiv(B, block_rows))
    if n_tiles == 1 and B >= 64:
        n_tiles = 2
    tm = _round_up(pl.cdiv(B, n_tiles), 8)
    b_pad = _round_up(B, tm)
    grid = (b_pad // tm,)

    # x augmented with a bias column of ones, zero-padded to (b_pad, k_pad).
    x = jnp.zeros((b_pad, k_pad), jnp.float32)
    x = x.at[:B, :in_nc].set(inp.astype(jnp.float32))
    x = x.at[:B, in_nc].set(1.0)

    # Hidden weights, K-major bf16, with b_h folded in as row `in_nc`.
    wh = jnp.zeros((k_pad, nc_pad), jnp.float32)
    wh = wh.at[:in_nc, :nc].set(w_h.astype(jnp.float32))
    wh = wh.at[in_nc, :nc].set(b_h.reshape(-1).astype(jnp.float32))
    wh = wh.astype(jnp.bfloat16)

    # Fused output heads, K-major lane-dense bf16 (nc_pad, 128); padded
    # rows/cols are zero so padded hidden columns contribute nothing.
    wot = jnp.zeros((nc_pad, N_PAD), jnp.float32)
    wot = wot.at[:nc, :w_o.shape[1]].set(w_o.astype(jnp.float32))
    wot = wot.astype(jnp.bfloat16)
    bo = jnp.zeros((1, N_PAD), jnp.float32).at[:, :b_o.size].set(
        b_o.reshape(1, -1).astype(jnp.float32))

    # Static nc-chunking plan (each chunk a multiple of 128 lanes).
    chunks = []
    c0 = 0
    while c0 < nc_pad:
        cs = min(NC_CHUNK, nc_pad - c0)
        chunks.append((c0, cs))
        c0 += cs
    chunks = tuple(chunks)

    y = pl.pallas_call(
        functools.partial(_nonlinear_multibin_kernel, chunks=chunks),
        out_shape=jax.ShapeDtypeStruct((b_pad, N_PAD), jnp.float32),
        grid=grid,
        in_specs=[
            pl.BlockSpec((tm, k_pad), lambda i: (i, 0)),       # streamed rows
            pl.BlockSpec((k_pad, nc_pad), lambda i: (0, 0)),   # resident weights
            pl.BlockSpec((nc_pad, N_PAD), lambda i: (0, 0)),   # resident weights
            pl.BlockSpec((1, N_PAD), lambda i: (0, 0)),
        ],
        out_specs=pl.BlockSpec((tm, N_PAD), lambda i: (i, 0)),
        compiler_params=pltpu.CompilerParams(
            dimension_semantics=("parallel",),
            vmem_limit_bytes=32 * 1024 * 1024),   # covers v5e's 16 MiB default; < v7x physical
    )(x, wh, wot, bo)

    y = y[:B, :N_OUT]
    out = y[:, 0:1]
    out0 = y[:, 1:1 + 18]
    out1 = y[:, 19:19 + 6]
    out2 = y[:, 25:25 + 4]
    return out, out0, out1, out2


def _init_linear(key, fan_in, fan_out):
    """Deterministic init mimicking nn.Linear default (uniform +-1/sqrt(fan_in)).
    Weight already transposed to (fan_in, fan_out); bias (1, fan_out)."""
    kw, kb = jax.random.split(key)
    bound = 1.0 / jnp.sqrt(jnp.float32(fan_in))
    w = jax.random.uniform(kw, (fan_in, fan_out), jnp.float32, -bound, bound)
    b = jax.random.uniform(kb, (1, fan_out), jnp.float32, -bound, bound)
    return w, b


def _reference(inp, w_h, b_h, w_o, b_o):
    h = inp @ w_h + b_h
    h = jnp.where(h > 0, h, 0.01 * h)
    y = h @ w_o + b_o
    return y[:, 0:1], y[:, 1:19], y[:, 19:25], y[:, 25:29]


if __name__ == "__main__":
    in_nc, nc = 3, 1600           # module defaults

    root = jax.random.PRNGKey(0)
    k_x, k_x2, k_h, k0, k1, k2, k3 = jax.random.split(root, 7)

    w_h, b_h = _init_linear(k_h, in_nc, nc)
    heads = [_init_linear(k, nc, n) for k, n in zip((k0, k1, k2, k3), HEAD_SIZES)]
    w_o = jnp.concatenate([w for w, _ in heads], axis=1)   # (nc, 29)
    b_o = jnp.concatenate([b for _, b in heads], axis=1)   # (1, 29)

    ok = True
    for batch, key in ((8, k_x), (130, k_x2)):   # 130 exercises padding + 2-tile grid
        inp = jax.random.normal(key, (batch, in_nc), jnp.float32)
        got = jax.block_until_ready(nonlinear_multibin(inp, w_h, b_h, w_o, b_o))
        refs = _reference(inp, w_h, b_h, w_o, b_o)
        for g, r in zip(got, refs):
            assert g.shape == r.shape, (g.shape, r.shape)
            # bf16 weights / activations through both contractions -> looser tol.
            ok &= bool(jnp.allclose(g, r, atol=3e-2, rtol=3e-2))
    assert ok
    print("KERNEL_OK")
</pallas_src>

<mosaic_0001>
module attributes {stable_mosaic.version = 11 : i64} {
  func.func @_nonlinear_multibin_kernel(%arg0: i32, %arg1: memref<8x8xf32, #tpu.memory_space<vmem>>, %arg2: memref<8x1664xbf16, #tpu.memory_space<vmem>>, %arg3: memref<1664x128xbf16, #tpu.memory_space<vmem>>, %arg4: memref<1x128xf32, #tpu.memory_space<vmem>>, %arg5: memref<8x128xf32, #tpu.memory_space<vmem>>) attributes {dimension_semantics = [#tpu.dimension_semantics<parallel>], iteration_bounds = array<i64: 1>, scalar_prefetch = 0 : i64, scratch_operands = 0 : i64, tpu.core_type = #tpu.core_type<tc>, window_params = [{transform_indices = @transform_0, window_bounds = array<i64: 8, 8>}, {pipeline_mode = #tpu.pipeline_mode<synchronous>, transform_indices = @transform_1, window_bounds = array<i64: 8, 1664>}, {pipeline_mode = #tpu.pipeline_mode<synchronous>, transform_indices = @transform_2, window_bounds = array<i64: 1664, 128>}, {pipeline_mode = #tpu.pipeline_mode<synchronous>, transform_indices = @transform_3, window_bounds = array<i64: 1, 128>}, {transform_indices = @transform_4, window_bounds = array<i64: 8, 128>}]} {
    %c0 = arith.constant 0 : index
    %c0_0 = arith.constant 0 : index
    %0 = vector.load %arg1[%c0, %c0_0] : memref<8x8xf32, #tpu.memory_space<vmem>>, vector<8x8xf32>
    %1 = arith.truncf %0 : vector<8x8xf32> to vector<8x8xbf16>
    %c0_1 = arith.constant 0 : index
    %c0_2 = arith.constant 0 : index
    %2 = vector.load %arg4[%c0_1, %c0_2] : memref<1x128xf32, #tpu.memory_space<vmem>>, vector<1x128xf32>
    %3 = vector.shape_cast %2 : vector<1x128xf32> to vector<1x128xf32>
    %4 = vector.broadcast %3 : vector<1x128xf32> to vector<8x128xf32>
    %c0_3 = arith.constant 0 : index
    %c0_4 = arith.constant 0 : index
    %5 = vector.load %arg2[%c0_3, %c0_4] : memref<8x1664xbf16, #tpu.memory_space<vmem>>, vector<8x512xbf16>
    %cst = arith.constant dense<0.000000e+00> : vector<8x512xf32>
    %6 = tpu.matmul %1, %5, %cst {dimension_numbers = #tpu.dot_dimension_numbers<[1], [0], [0], [1], [0, 0, 1, 1], [], []>} : vector<8x8xbf16>, vector<8x512xbf16>, vector<8x512xf32> -> vector<8x512xf32>
    %cst_5 = arith.constant 0.000000e+00 : f32
    %7 = vector.broadcast %cst_5 : f32 to vector<8x512xf32>
    %8 = arith.cmpf ogt, %6, %7 : vector<8x512xf32>
    %cst_6 = arith.constant 0.00999999977 : f32
    %9 = vector.broadcast %cst_6 : f32 to vector<8x512xf32>
    %10 = arith.mulf %9, %6 : vector<8x512xf32>
    %11 = arith.select %8, %6, %10 : vector<8x512xi1>, vector<8x512xf32>
    %12 = arith.truncf %11 : vector<8x512xf32> to vector<8x512xbf16>
    %c0_7 = arith.constant 0 : index
    %c0_8 = arith.constant 0 : index
    %13 = vector.load %arg3[%c0_7, %c0_8] : memref<1664x128xbf16, #tpu.memory_space<vmem>>, vector<512x128xbf16>
    %cst_9 = arith.constant dense<0.000000e+00> : vector<8x128xf32>
    %14 = tpu.matmul %12, %13, %cst_9 {dimension_numbers = #tpu.dot_dimension_numbers<[1], [0], [0], [1], [0, 0, 1, 1], [], []>} : vector<8x512xbf16>, vector<512x128xbf16>, vector<8x128xf32> -> vector<8x128xf32>
    %15 = arith.addf %4, %14 : vector<8x128xf32>
    %c0_10 = arith.constant 0 : index
    %c512 = arith.constant 512 : index
    %16 = vector.load %arg2[%c0_10, %c512] : memref<8x1664xbf16, #tpu.memory_space<vmem>>, vector<8x512xbf16>
    %cst_11 = arith.constant dense<0.000000e+00> : vector<8x512xf32>
    %17 = tpu.matmul %1, %16, %cst_11 {dimension_numbers = #tpu.dot_dimension_numbers<[1], [0], [0], [1], [0, 0, 1, 1], [], []>} : vector<8x8xbf16>, vector<8x512xbf16>, vector<8x512xf32> -> vector<8x512xf32>
    %cst_12 = arith.constant 0.000000e+00 : f32
    %18 = vector.broadcast %cst_12 : f32 to vector<8x512xf32>
    %19 = arith.cmpf ogt, %17, %18 : vector<8x512xf32>
    %cst_13 = arith.constant 0.00999999977 : f32
    %20 = vector.broadcast %cst_13 : f32 to vector<8x512xf32>
    %21 = arith.mulf %20, %17 : vector<8x512xf32>
    %22 = arith.select %19, %17, %21 : vector<8x512xi1>, vector<8x512xf32>
    %23 = arith.truncf %22 : vector<8x512xf32> to vector<8x512xbf16>
    %c512_14 = arith.constant 512 : index
    %c0_15 = arith.constant 0 : index
    %24 = vector.load %arg3[%c512_14, %c0_15] : memref<1664x128xbf16, #tpu.memory_space<vmem>>, vector<512x128xbf16>
    %cst_16 = arith.constant dense<0.000000e+00> : vector<8x128xf32>
    %25 = tpu.matmul %23, %24, %cst_16 {dimension_numbers = #tpu.dot_dimension_numbers<[1], [0], [0], [1], [0, 0, 1, 1], [], []>} : vector<8x512xbf16>, vector<512x128xbf16>, vector<8x128xf32> -> vector<8x128xf32>
    %26 = arith.addf %15, %25 : vector<8x128xf32>
    %c0_17 = arith.constant 0 : index
    %c1024 = arith.constant 1024 : index
    %27 = vector.load %arg2[%c0_17, %c1024] : memref<8x1664xbf16, #tpu.memory_space<vmem>>, vector<8x512xbf16>
    %cst_18 = arith.constant dense<0.000000e+00> : vector<8x512xf32>
    %28 = tpu.matmul %1, %27, %cst_18 {dimension_numbers = #tpu.dot_dimension_numbers<[1], [0], [0], [1], [0, 0, 1, 1], [], []>} : vector<8x8xbf16>, vector<8x512xbf16>, vector<8x512xf32> -> vector<8x512xf32>
    %cst_19 = arith.constant 0.000000e+00 : f32
    %29 = vector.broadcast %cst_19 : f32 to vector<8x512xf32>
    %30 = arith.cmpf ogt, %28, %29 : vector<8x512xf32>
    %cst_20 = arith.constant 0.00999999977 : f32
    %31 = vector.broadcast %cst_20 : f32 to vector<8x512xf32>
    %32 = arith.mulf %31, %28 : vector<8x512xf32>
    %33 = arith.select %30, %28, %32 : vector<8x512xi1>, vector<8x512xf32>
    %34 = arith.truncf %33 : vector<8x512xf32> to vector<8x512xbf16>
    %c1024_21 = arith.constant 1024 : index
    %c0_22 = arith.constant 0 : index
    %35 = vector.load %arg3[%c1024_21, %c0_22] : memref<1664x128xbf16, #tpu.memory_space<vmem>>, vector<512x128xbf16>
    %cst_23 = arith.constant dense<0.000000e+00> : vector<8x128xf32>
    %36 = tpu.matmul %34, %35, %cst_23 {dimension_numbers = #tpu.dot_dimension_numbers<[1], [0], [0], [1], [0, 0, 1, 1], [], []>} : vector<8x512xbf16>, vector<512x128xbf16>, vector<8x128xf32> -> vector<8x128xf32>
    %37 = arith.addf %26, %36 : vector<8x128xf32>
    %c0_24 = arith.constant 0 : index
    %c1536 = arith.constant 1536 : index
    %38 = vector.load %arg2[%c0_24, %c1536] : memref<8x1664xbf16, #tpu.memory_space<vmem>>, vector<8x128xbf16>
    %cst_25 = arith.constant dense<0.000000e+00> : vector<8x128xf32>
    %39 = tpu.matmul %1, %38, %cst_25 {dimension_numbers = #tpu.dot_dimension_numbers<[1], [0], [0], [1], [0, 0, 1, 1], [], []>} : vector<8x8xbf16>, vector<8x128xbf16>, vector<8x128xf32> -> vector<8x128xf32>
    %cst_26 = arith.constant 0.000000e+00 : f32
    %40 = vector.broadcast %cst_26 : f32 to vector<8x128xf32>
    %41 = arith.cmpf ogt, %39, %40 : vector<8x128xf32>
    %cst_27 = arith.constant 0.00999999977 : f32
    %42 = vector.broadcast %cst_27 : f32 to vector<8x128xf32>
    %43 = arith.mulf %42, %39 : vector<8x128xf32>
    %44 = arith.select %41, %39, %43 : vector<8x128xi1>, vector<8x128xf32>
    %45 = arith.truncf %44 : vector<8x128xf32> to vector<8x128xbf16>
    %c1536_28 = arith.constant 1536 : index
    %c0_29 = arith.constant 0 : index
    %46 = vector.load %arg3[%c1536_28, %c0_29] : memref<1664x128xbf16, #tpu.memory_space<vmem>>, vector<128x128xbf16>
    %cst_30 = arith.constant dense<0.000000e+00> : vector<8x128xf32>
    %47 = tpu.matmul %45, %46, %cst_30 {dimension_numbers = #tpu.dot_dimension_numbers<[1], [0], [0], [1], [0, 0, 1, 1], [], []>} : vector<8x128xbf16>, vector<128x128xbf16>, vector<8x128xf32> -> vector<8x128xf32>
    %48 = arith.addf %37, %47 : vector<8x128xf32>
    %c0_31 = arith.constant 0 : index
    %c0_32 = arith.constant 0 : index
    %49 = vector.load %arg5[%c0_31, %c0_32] : memref<8x128xf32, #tpu.memory_space<vmem>>, vector<8x128xf32>
    tpu.vector_store %arg5[%c0_31, %c0_32], %48 {strides = array<i32>} : memref<8x128xf32, #tpu.memory_space<vmem>>, vector<8x128xf32>,
    return
  }
  func.func @transform_0(%arg0: i32) -> (i32, i32) {
    %c0_i32 = arith.constant 0 : i32
    %c0_i32_0 = arith.constant 0 : i32
    return %arg0, %c0_i32 : i32, i32
  }
  func.func @transform_1(%arg0: i32) -> (i32, i32) {
    %c0_i32 = arith.constant 0 : i32
    %c0_i32_0 = arith.constant 0 : i32
    %c0_i32_1 = arith.constant 0 : i32
    return %c0_i32, %c0_i32_0 : i32, i32
  }
  func.func @transform_2(%arg0: i32) -> (i32, i32) {
    %c0_i32 = arith.constant 0 : i32
    %c0_i32_0 = arith.constant 0 : i32
    %c0_i32_1 = arith.constant 0 : i32
    return %c0_i32, %c0_i32_0 : i32, i32
  }
  func.func @transform_3(%arg0: i32) -> (i32, i32) {
    %c0_i32 = arith.constant 0 : i32
    %c0_i32_0 = arith.constant 0 : i32
    %c0_i32_1 = arith.constant 0 : i32
    return %c0_i32, %c0_i32_0 : i32, i32
  }
  func.func @transform_4(%arg0: i32) -> (i32, i32) {
    %c0_i32 = arith.constant 0 : i32
    %c0_i32_0 = arith.constant 0 : i32
    return %arg0, %c0_i32 : i32, i32
  }
}

</mosaic_0001>

<llo_original>
// kernel: nonlinear_multibin.1
$region0: #{nonlinear_multibin.1}
  #allocation0 [shape = 'u32[]', space=smem, size = 0x4, offset = 0x4, fixed_abs, tag = 'smem constant byte address 0x4 - core index']
  #allocation1 [shape = 'u32[144,128]{1,0:T(1,128)}', space=vmem, size = 0x12000, scoped, tag = 'internal scratch']
  %s0 = inlined_call_operand.vmem [shape: f32[8,8], index: 0, kind: input, shape index: {}]
  %s1 = inlined_call_operand.vmem [shape: bf16[8,1664], index: 1, kind: input, shape index: {}]
  %s2 = inlined_call_operand.vmem [shape: bf16[1664,128], index: 2, kind: input, shape index: {}]
  %s3 = inlined_call_operand.vmem [shape: f32[1,128], index: 3, kind: input, shape index: {}]
  %s4 = inlined_call_operand.vmem [shape: f32[8,128], index: 4, kind: output, shape index: {}]
  %s5 = sld [smem:[#allocation0]]
  $region26: #{nonlinear_multibin.1} parent=0
    _
  %s7 = ssub.s32 1, %s5
  %s8 = scalar_select 0, %s7, %s5
  // Predicated region
  $region2: #{nonlinear_multibin.1} parent=0 // pred_check
    _
  $region3: #{nonlinear_multibin.1} parent=0 // pred_check_branch
    %10 = sbr.rel (0) target = $region5
  $region4: #{nonlinear_multibin.1} parent=0 // pred_region
    _
  $region5: #{nonlinear_multibin.1} parent=0 // pred_fallthru
    _
  // Predicated region
  $region6: #{nonlinear_multibin.1} parent=0 // pred_check
    _
  $region7: #{nonlinear_multibin.1} parent=0 // pred_check_branch
    %12 = sbr.rel (0) target = $region9
  $region8: #{nonlinear_multibin.1} parent=0 // pred_region
    _
  $region9: #{nonlinear_multibin.1} parent=0 // pred_fallthru
    _
  // Predicated region
  $region10: #{nonlinear_multibin.1} parent=0 // pred_check
    _
  $region11: #{nonlinear_multibin.1} parent=0 // pred_check_branch
    %14 = sbr.rel (0) target = $region13
  $region12: #{nonlinear_multibin.1} parent=0 // pred_region
    _
  $region13: #{nonlinear_multibin.1} parent=0 // pred_fallthru
    _
  // Predicated region
  $region14: #{nonlinear_multibin.1} parent=0 // pred_check
    _
  $region15: #{nonlinear_multibin.1} parent=0 // pred_check_branch
    %16 = sbr.rel (0) target = $region17
  $region16: #{nonlinear_multibin.1} parent=0 // pred_region
    _
  $region17: #{nonlinear_multibin.1} parent=0 // pred_fallthru
    _
  %v18 = vld [vmem:[%s0] sm:$0xff]
  %v19 = vpack.c.bf16 %v18, %v18
  %v20 = vld [vmem:[%s3] sm:$0x1]
  %v22 = vlaneseq
  %v23 = vshrl.u32 %v22, 7
  %v24 = vsub.s32 0, %v23
  %v25 = vrot.slane %v20, %v24
  %v27 = vld [vmem:[%s1] sm:$0xff]
  %v28 = vld [vmem:[%s1 + $0x8] sm:$0xff]
  %v31 = vunpack.c.l.b16 %v27
  %v32 = vunpack.c.h.b16 %v27
  %v33 = vunpack.c.l.b16 %v28
  %v34 = vunpack.c.h.b16 %v28
  %v35 = vpack.c.b16 %v31, %v31
  %v36 = vpack.c.b16 %v32, %v32
  %v37 = vpack.c.b16 %v33, %v33
  %v38 = vpack.c.b16 %v34, %v34
  %vm39 = vcmask 64512
  %v41 = vsel %vm39, %v19, 0
  %vm43 = vcmask 1043456
  %v45 = vsel %vm43, %v35, 0
  %v48 = vsel %vm43, %v36, 0
  %v51 = vsel %vm43, %v37, 0
  %v54 = vsel %vm43, %v38, 0
  %56 = vmatprep.subr.bf16.mxu0 %v48
  %57 = vmatpush1.bf16.msra.mxu0 %v45
  %58 = vmatprep.subr.bf16.mxu0 0
  %59 = vmatpush1.bf16.msra.mxu0 0
  %60 = vmatprep.subr.bf16.mxu0 0
  %61 = vmatpush1.bf16.msra.mxu0 0
  %62 = vmatprep.subr.bf16.mxu0 0
  %63 = vmatpush1.bf16.msra.mxu0 0
  %64 = vmatprep.subr.bf16.mxu0 0
  %65 = vmatpush1.bf16.msra.mxu0 0
  %66 = vmatprep.subr.bf16.mxu0 0
  %67 = vmatpush1.bf16.msra.mxu0 0
  %68 = vmatprep.subr.bf16.mxu0 0
  %69 = vmatpush1.bf16.msra.mxu0 0
  %70 = vmatprep.subr.bf16.mxu0 0
  %71 = vmatpush1.bf16.msra.mxu0 0
  %72 = vmatprep.subr.bf16.mxu0 0
  %73 = vmatpush1.bf16.msra.mxu0 0
  %74 = vmatprep.subr.bf16.mxu0 0
  %75 = vmatpush1.bf16.msra.mxu0 0
  %76 = vmatprep.subr.bf16.mxu0 0
  %77 = vmatpush1.bf16.msra.mxu0 0
  %78 = vmatprep.subr.bf16.mxu0 0
  %79 = vmatpush1.bf16.msra.mxu0 0
  %80 = vmatprep.subr.bf16.mxu0 0
  %81 = vmatpush1.bf16.msra.mxu0 0
  %82 = vmatprep.subr.bf16.mxu0 0
  %83 = vmatpush1.bf16.msra.mxu0 0
  %84 = vmatprep.subr.bf16.mxu0 0
  %85 = vmatpush1.bf16.msra.mxu0 0
  %86 = vmatprep.subr.bf16.mxu0 0
  %87 = vmatpush1.bf16.msra.mxu0 0
  %88 = vmatprep.mubr.bf16.mxu0 0
  %89 = vmatmul.mubr.bf16.gmra.mrb[0].mxu0 %v41
  %v90 = vpop.f32.mrb[0].mxu0
  %v91 = vadd.f32 0.0, %v90
  %v92 = vpop.f32.mrb[0].mxu0
  %v93 = vadd.f32 0.0, %v92
  %v94 = vpop.f32.mrb[0].mxu0
  %v95 = vpop.f32.mrb[0].mxu0
  %96 = vdwg.mxu0
  %97 = vmatprep.subr.bf16.mxu0 %v54
  %98 = vmatpush1.bf16.msra.mxu0 %v51
  %99 = vmatprep.subr.bf16.mxu0 0
  %100 = vmatpush1.bf16.msra.mxu0 0
  %101 = vmatprep.subr.bf16.mxu0 0
  %102 = vmatpush1.bf16.msra.mxu0 0
  %103 = vmatprep.subr.bf16.mxu0 0
  %104 = vmatpush1.bf16.msra.mxu0 0
  %105 = vmatprep.subr.bf16.mxu0 0
  %106 = vmatpush1.bf16.msra.mxu0 0
  %107 = vmatprep.subr.bf16.mxu0 0
  %108 = vmatpush1.bf16.msra.mxu0 0
  %109 = vmatprep.subr.bf16.mxu0 0
  %110 = vmatpush1.bf16.msra.mxu0 0
  %111 = vmatprep.subr.bf16.mxu0 0
  %112 = vmatpush1.bf16.msra.mxu0 0
  %113 = vmatprep.subr.bf16.mxu0 0
  %114 = vmatpush1.bf16.msra.mxu0 0
  %115 = vmatprep.subr.bf16.mxu0 0
  %116 = vmatpush1.bf16.msra.mxu0 0
  %117 = vmatprep.subr.bf16.mxu0 0
  %118 = vmatpush1.bf16.msra.mxu0 0
  %119 = vmatprep.subr.bf16.mxu0 0
  %120 = vmatpush1.bf16.msra.mxu0 0
  %121 = vmatprep.subr.bf16.mxu0 0
  %122 = vmatpush1.bf16.msra.mxu0 0
  %123 = vmatprep.subr.bf16.mxu0 0
  %124 = vmatpush1.bf16.msra.mxu0 0
  %125 = vmatprep.subr.bf16.mxu0 0
  %126 = vmatpush1.bf16.msra.mxu0 0
  %127 = vmatprep.subr.bf16.mxu0 0
  %128 = vmatpush1.bf16.msra.mxu0 0
  %129 = vmatprep.mubr.bf16.mxu0 0
  %130 = vmatmul.mubr.bf16.gmra.mrb[0].mxu0 %v41
  %v131 = vpop.f32.mrb[0].mxu0
  %v132 = vadd.f32 0.0, %v131
  %v133 = vpop.f32.mrb[0].mxu0
  %v134 = vadd.f32 0.0, %v133
  %v135 = vpop.f32.mrb[0].mxu0
  %v136 = vpop.f32.mrb[0].mxu0
  %137 = vdwg.mxu0
  %vm138 = vcmp.gt.f32.partialorder %v91, 0.0
  %vm139 = vcmp.gt.f32.partialorder %v93, 0.0
  %vm140 = vcmp.gt.f32.partialorder %v132, 0.0
  %vm141 = vcmp.gt.f32.partialorder %v134, 0.0
  %v142 = vmul.f32 %v91, 0.01
  %v143 = vmul.f32 %v93, 0.01
  %v144 = vmul.f32 %v132, 0.01
  %v145 = vmul.f32 %v134, 0.01
  %v146 = vsel %vm138, %v91, %v142
  %v147 = vsel %vm139, %v93, %v143
  %v148 = vsel %vm140, %v132, %v144
  %v149 = vsel %vm141, %v134, %v145
  %v150 = vpack.c.bf16 %v146, %v146
  %v151 = vpack.c.bf16 %v147, %v147
  %v152 = vpack.c.bf16 %v148, %v148
  %v153 = vpack.c.bf16 %v149, %v149
  %v154 = vld [vmem:[%s2] sm:$0xf]
  %v155 = vld [vmem:[%s2 + $0x4] sm:$0xf]
  %v156 = vld [vmem:[%s2 + $0x8] sm:$0xf]
  %v157 = vld [vmem:[%s2 + $0xc] sm:$0xf]
  %v158 = vld [vmem:[%s2 + $0x10] sm:$0xf]
  %v159 = vld [vmem:[%s2 + $0x14] sm:$0xf]
  %v160 = vld [vmem:[%s2 + $0x18] sm:$0xf]
  %v161 = vld [vmem:[%s2 + $0x1c] sm:$0xf]
  %v162 = vld [vmem:[%s2 + $0x20] sm:$0xf]
  %v163 = vld [vmem:[%s2 + $0x24] sm:$0xf]
  %v164 = vld [vmem:[%s2 + $0x28] sm:$0xf]
  %v165 = vld [vmem:[%s2 + $0x2c] sm:$0xf]
  %v166 = vld [vmem:[%s2 + $0x30] sm:$0xf]
  %v167 = vld [vmem:[%s2 + $0x34] sm:$0xf]
  %v168 = vld [vmem:[%s2 + $0x38] sm:$0xf]
  %v169 = vld [vmem:[%s2 + $0x3c] sm:$0xf]
  %v170 = vld [vmem:[%s2 + $0x40] sm:$0xf]
  %v171 = vld [vmem:[%s2 + $0x44] sm:$0xf]
  %v172 = vld [vmem:[%s2 + $0x48] sm:$0xf]
  %v173 = vld [vmem:[%s2 + $0x4c] sm:$0xf]
  %v174 = vld [vmem:[%s2 + $0x50] sm:$0xf]
  %v175 = vld [vmem:[%s2 + $0x54] sm:$0xf]
  %v176 = vld [vmem:[%s2 + $0x58] sm:$0xf]
  %v177 = vld [vmem:[%s2 + $0x5c] sm:$0xf]
  %v178 = vld [vmem:[%s2 + $0x60] sm:$0xf]
  %v179 = vld [vmem:[%s2 + $0x64] sm:$0xf]
  %v180 = vld [vmem:[%s2 + $0x68] sm:$0xf]
  %v181 = vld [vmem:[%s2 + $0x6c] sm:$0xf]
  %v182 = vld [vmem:[%s2 + $0x70] sm:$0xf]
  %v183 = vld [vmem:[%s2 + $0x74] sm:$0xf]
  %v184 = vld [vmem:[%s2 + $0x78] sm:$0xf]
  %v185 = vld [vmem:[%s2 + $0x7c] sm:$0xf]
  %v186 = vld [vmem:[%s2 + $0x80] sm:$0xf]
  %v187 = vld [vmem:[%s2 + $0x84] sm:$0xf]
  %v188 = vld [vmem:[%s2 + $0x88] sm:$0xf]
  %v189 = vld [vmem:[%s2 + $0x8c] sm:$0xf]
  %v190 = vld [vmem:[%s2 + $0x90] sm:$0xf]
  %v191 = vld [vmem:[%s2 + $0x94] sm:$0xf]
  %v192 = vld [vmem:[%s2 + $0x98] sm:$0xf]
  %v193 = vld [vmem:[%s2 + $0x9c] sm:$0xf]
  %v194 = vld [vmem:[%s2 + $0xa0] sm:$0xf]
  %v195 = vld [vmem:[%s2 + $0xa4] sm:$0xf]
  %v196 = vld [vmem:[%s2 + $0xa8] sm:$0xf]
  %v197 = vld [vmem:[%s2 + $0xac] sm:$0xf]
  %v198 = vld [vmem:[%s2 + $0xb0] sm:$0xf]
  %v199 = vld [vmem:[%s2 + $0xb4] sm:$0xf]
  %v200 = vld [vmem:[%s2 + $0xb8] sm:$0xf]
  %v201 = vld [vmem:[%s2 + $0xbc] sm:$0xf]
  %v202 = vld [vmem:[%s2 + $0xc0] sm:$0xf]
  %v203 = vld [vmem:[%s2 + $0xc4] sm:$0xf]
  %v204 = vld [vmem:[%s2 + $0xc8] sm:$0xf]
  %v205 = vld [vmem:[%s2 + $0xcc] sm:$0xf]
  %v206 = vld [vmem:[%s2 + $0xd0] sm:$0xf]
  %v207 = vld [vmem:[%s2 + $0xd4] sm:$0xf]
  %v208 = vld [vmem:[%s2 + $0xd8] sm:$0xf]
  %v209 = vld [vmem:[%s2 + $0xdc] sm:$0xf]
  %v210 = vld [vmem:[%s2 + $0xe0] sm:$0xf]
  %v211 = vld [vmem:[%s2 + $0xe4] sm:$0xf]
  %v212 = vld [vmem:[%s2 + $0xe8] sm:$0xf]
  %v213 = vld [vmem:[%s2 + $0xec] sm:$0xf]
  %v214 = vld [vmem:[%s2 + $0xf0] sm:$0xf]
  %v215 = vld [vmem:[%s2 + $0xf4] sm:$0xf]
  %v216 = vld [vmem:[%s2 + $0xf8] sm:$0xf]
  %v217 = vld [vmem:[%s2 + $0xfc] sm:$0xf]
  %v282 = vunpack.c.l.b16 %v154
  %v283 = vunpack.c.l.b16 %v155
  %v284 = vunpack.c.l.b16 %v156
  %v285 = vunpack.c.l.b16 %v157
  %v286 = vunpack.c.l.b16 %v158
  %v287 = vunpack.c.l.b16 %v159
  %v288 = vunpack.c.l.b16 %v160
  %v289 = vunpack.c.l.b16 %v161
  %v290 = vunpack.c.l.b16 %v162
  %v291 = vunpack.c.l.b16 %v163
  %v292 = vunpack.c.l.b16 %v164
  %v293 = vunpack.c.l.b16 %v165
  %v294 = vunpack.c.l.b16 %v166
  %v295 = vunpack.c.l.b16 %v167
  %v296 = vunpack.c.l.b16 %v168
  %v297 = vunpack.c.l.b16 %v169
  %v298 = vunpack.c.l.b16 %v170
  %v299 = vunpack.c.l.b16 %v171
  %v300 = vunpack.c.l.b16 %v172
  %v301 = vunpack.c.l.b16 %v173
  %v302 = vunpack.c.l.b16 %v174
  %v303 = vunpack.c.l.b16 %v175
  %v304 = vunpack.c.l.b16 %v176
  %v305 = vunpack.c.l.b16 %v177
  %v306 = vunpack.c.l.b16 %v178
  %v307 = vunpack.c.l.b16 %v179
  %v308 = vunpack.c.l.b16 %v180
  %v309 = vunpack.c.l.b16 %v181
  %v310 = vunpack.c.l.b16 %v182
  %v311 = vunpack.c.l.b16 %v183
  %v312 = vunpack.c.l.b16 %v184
  %v313 = vunpack.c.l.b16 %v185
  %v314 = vunpack.c.l.b16 %v186
  %v315 = vunpack.c.l.b16 %v187
  %v316 = vunpack.c.l.b16 %v188
  %v317 = vunpack.c.l.b16 %v189
  %v318 = vunpack.c.l.b16 %v190
  %v319 = vunpack.c.l.b16 %v191
  %v320 = vunpack.c.l.b16 %v192
  %v321 = vunpack.c.l.b16 %v193
  %v322 = vunpack.c.l.b16 %v194
  %v323 = vunpack.c.l.b16 %v195
  %v324 = vunpack.c.l.b16 %v196
  %v325 = vunpack.c.l.b16 %v197
  %v326 = vunpack.c.l.b16 %v198
  %v327 = vunpack.c.l.b16 %v199
  %v328 = vunpack.c.l.b16 %v200
  %v329 = vunpack.c.l.b16 %v201
  %v330 = vunpack.c.l.b16 %v202
  %v331 = vunpack.c.l.b16 %v203
  %v332 = vunpack.c.l.b16 %v204
  %v333 = vunpack.c.l.b16 %v205
  %v334 = vunpack.c.l.b16 %v206
  %v335 = vunpack.c.l.b16 %v207
  %v336 = vunpack.c.l.b16 %v208
  %v337 = vunpack.c.l.b16 %v209
  %v338 = vunpack.c.l.b16 %v210
  %v339 = vunpack.c.l.b16 %v211
  %v340 = vunpack.c.l.b16 %v212
  %v341 = vunpack.c.l.b16 %v213
  %v342 = vunpack.c.l.b16 %v214
  %v343 = vunpack.c.l.b16 %v215
  %v344 = vunpack.c.l.b16 %v216
  %v345 = vunpack.c.l.b16 %v217
  %v346 = vpack.c.b16 %v283, %v282
  %v347 = vpack.c.b16 %v285, %v284
  %v348 = vpack.c.b16 %v287, %v286
  %v349 = vpack.c.b16 %v289, %v288
  %v350 = vpack.c.b16 %v291, %v290
  %v351 = vpack.c.b16 %v293, %v292
  %v352 = vpack.c.b16 %v295, %v294
  %v353 = vpack.c.b16 %v297, %v296
  %v354 = vpack.c.b16 %v299, %v298
  %v355 = vpack.c.b16 %v301, %v300
  %v356 = vpack.c.b16 %v303, %v302
  %v357 = vpack.c.b16 %v305, %v304
  %v358 = vpack.c.b16 %v307, %v306
  %v359 = vpack.c.b16 %v309, %v308
  %v360 = vpack.c.b16 %v311, %v310
  %v361 = vpack.c.b16 %v313, %v312
  %v362 = vpack.c.b16 %v315, %v314
  %v363 = vpack.c.b16 %v317, %v316
  %v364 = vpack.c.b16 %v319, %v318
  %v365 = vpack.c.b16 %v321, %v320
  %v366 = vpack.c.b16 %v323, %v322
  %v367 = vpack.c.b16 %v325, %v324
  %v368 = vpack.c.b16 %v327, %v326
  %v369 = vpack.c.b16 %v329, %v328
  %v370 = vpack.c.b16 %v331, %v330
  %v371 = vpack.c.b16 %v333, %v332
  %v372 = vpack.c.b16 %v335, %v334
  %v373 = vpack.c.b16 %v337, %v336
  %v374 = vpack.c.b16 %v339, %v338
  %v375 = vpack.c.b16 %v341, %v340
  %v376 = vpack.c.b16 %v343, %v342
  %v377 = vpack.c.b16 %v345, %v344
  %410 = vmatprep.subr.bf16.mxu0 0
  %411 = vmatpush1.bf16.msra.mxu0 %v346
  %412 = vmatprep.subr.bf16.mxu0 0
  %413 = vmatpush1.bf16.msra.mxu0 %v347
  %414 = vmatprep.subr.bf16.mxu0 0
  %415 = vmatpush1.bf16.msra.mxu0 %v348
  %416 = vmatprep.subr.bf16.mxu0 0
  %417 = vmatpush1.bf16.msra.mxu0 %v349
  %418 = vmatprep.subr.bf16.mxu0 0
  %419 = vmatpush1.bf16.msra.mxu0 %v350
  %420 = vmatprep.subr.bf16.mxu0 0
  %421 = vmatpush1.bf16.msra.mxu0 %v351
  %422 = vmatprep.subr.bf16.mxu0 0
  %423 = vmatpush1.bf16.msra.mxu0 %v352
  %424 = vmatprep.subr.bf16.mxu0 0
  %425 = vmatpush1.bf16.msra.mxu0 %v353
  %426 = vmatprep.subr.bf16.mxu0 0
  %427 = vmatpush1.bf16.msra.mxu0 %v354
  %428 = vmatprep.subr.bf16.mxu0 0
  %429 = vmatpush1.bf16.msra.mxu0 %v355
  %430 = vmatprep.subr.bf16.mxu0 0
  %431 = vmatpush1.bf16.msra.mxu0 %v356
  %432 = vmatprep.subr.bf16.mxu0 0
  %433 = vmatpush1.bf16.msra.mxu0 %v357
  %434 = vmatprep.subr.bf16.mxu0 0
  %435 = vmatpush1.bf16.msra.mxu0 %v358
  %436 = vmatprep.subr.bf16.mxu0 0
  %437 = vmatpush1.bf16.msra.mxu0 %v359
  %438 = vmatprep.subr.bf16.mxu0 0
  %439 = vmatpush1.bf16.msra.mxu0 %v360
  %440 = vmatprep.subr.bf16.mxu0 0
  %441 = vmatpush1.bf16.msra.mxu0 %v361
  %442 = vmatprep.mubr.bf16.mxu0 %v151
  %443 = vmatmul.mubr.bf16.gmra.mrb[0].mxu0 %v150
  %v444 = vpop.f32.mrb[0].mxu0
  %v445 = vadd.f32 0.0, %v444
  %v446 = vpop.f32.mrb[0].mxu0
  %v447 = vpop.f32.mrb[0].mxu0
  %v448 = vpop.f32.mrb[0].mxu0
  %449 = vdwg.mxu0
  %450 = vmatprep.subr.bf16.mxu0 0
  %451 = vmatpush1.bf16.msra.mxu0 %v362
  %452 = vmatprep.subr.bf16.mxu0 0
  %453 = vmatpush1.bf16.msra.mxu0 %v363
  %454 = vmatprep.subr.bf16.mxu0 0
  %455 = vmatpush1.bf16.msra.mxu0 %v364
  %456 = vmatprep.subr.bf16.mxu0 0
  %457 = vmatpush1.bf16.msra.mxu0 %v365
  %458 = vmatprep.subr.bf16.mxu0 0
  %459 = vmatpush1.bf16.msra.mxu0 %v366
  %460 = vmatprep.subr.bf16.mxu0 0
  %461 = vmatpush1.bf16.msra.mxu0 %v367
  %462 = vmatprep.subr.bf16.mxu0 0
  %463 = vmatpush1.bf16.msra.mxu0 %v368
  %464 = vmatprep.subr.bf16.mxu0 0
  %465 = vmatpush1.bf16.msra.mxu0 %v369
  %466 = vmatprep.subr.bf16.mxu0 0
  %467 = vmatpush1.bf16.msra.mxu0 %v370
  %468 = vmatprep.subr.bf16.mxu0 0
  %469 = vmatpush1.bf16.msra.mxu0 %v371
  %470 = vmatprep.subr.bf16.mxu0 0
  %471 = vmatpush1.bf16.msra.mxu0 %v372
  %472 = vmatprep.subr.bf16.mxu0 0
  %473 = vmatpush1.bf16.msra.mxu0 %v373
  %474 = vmatprep.subr.bf16.mxu0 0
  %475 = vmatpush1.bf16.msra.mxu0 %v374
  %476 = vmatprep.subr.bf16.mxu0 0
  %477 = vmatpush1.bf16.msra.mxu0 %v375
  %478 = vmatprep.subr.bf16.mxu0 0
  %479 = vmatpush1.bf16.msra.mxu0 %v376
  %480 = vmatprep.subr.bf16.mxu0 0
  %481 = vmatpush1.bf16.msra.mxu0 %v377
  %482 = vmatprep.mubr.bf16.mxu0 %v153
  %483 = vmatmul.mubr.bf16.gmra.mrb[0].mxu0 %v152
  %v484 = vpop.f32.mrb[0].mxu0
  %v485 = vadd.f32 %v445, %v484
  %v486 = vpop.f32.mrb[0].mxu0
  %v487 = vpop.f32.mrb[0].mxu0
  %v488 = vpop.f32.mrb[0].mxu0
  %489 = vdwg.mxu0
  %v490 = vadd.f32 %v25, %v485
  %v491 = vld [vmem:[%s1 + $0x10] sm:$0xff]
  %v492 = vld [vmem:[%s1 + $0x18] sm:$0xff]
  %v495 = vunpack.c.l.b16 %v491
  %v496 = vunpack.c.h.b16 %v491
  %v497 = vunpack.c.l.b16 %v492
  %v498 = vunpack.c.h.b16 %v492
  %v499 = vpack.c.b16 %v495, %v495
  %v500 = vpack.c.b16 %v496, %v496
  %v501 = vpack.c.b16 %v497, %v497
  %v502 = vpack.c.b16 %v498, %v498
  %v504 = vsel %vm43, %v499, 0
  %v507 = vsel %vm43, %v500, 0
  %v510 = vsel %vm43, %v501, 0
  %v513 = vsel %vm43, %v502, 0
  %515 = vmatprep.subr.bf16.mxu0 %v507
  %516 = vmatpush1.bf16.msra.mxu0 %v504
  %517 = vmatprep.subr.bf16.mxu0 0
  %518 = vmatpush1.bf16.msra.mxu0 0
  %519 = vmatprep.subr.bf16.mxu0 0
  %520 = vmatpush1.bf16.msra.mxu0 0
  %521 = vmatprep.subr.bf16.mxu0 0
  %522 = vmatpush1.bf16.msra.mxu0 0
  %523 = vmatprep.subr.bf16.mxu0 0
  %524 = vmatpush1.bf16.msra.mxu0 0
  %525 = vmatprep.subr.bf16.mxu0 0
  %526 = vmatpush1.bf16.msra.mxu0 0
  %527 = vmatprep.subr.bf16.mxu0 0
  %528 = vmatpush1.bf16.msra.mxu0 0
  %529 = vmatprep.subr.bf16.mxu0 0
  %530 = vmatpush1.bf16.msra.mxu0 0
  %531 = vmatprep.subr.bf16.mxu0 0
  %532 = vmatpush1.bf16.msra.mxu0 0
  %533 = vmatprep.subr.bf16.mxu0 0
  %534 = vmatpush1.bf16.msra.mxu0 0
  %535 = vmatprep.subr.bf16.mxu0 0
  %536 = vmatpush1.bf16.msra.mxu0 0
  %537 = vmatprep.subr.bf16.mxu0 0
  %538 = vmatpush1.bf16.msra.mxu0 0
  %539 = vmatprep.subr.bf16.mxu0 0
  %540 = vmatpush1.bf16.msra.mxu0 0
  %541 = vmatprep.subr.bf16.mxu0 0
  %542 = vmatpush1.bf16.msra.mxu0 0
  %543 = vmatprep.subr.bf16.mxu0 0
  %544 = vmatpush1.bf16.msra.mxu0 0
  %545 = vmatprep.subr.bf16.mxu0 0
  %546 = vmatpush1.bf16.msra.mxu0 0
  %547 = vmatprep.mubr.bf16.mxu0 0
  %548 = vmatmul.mubr.bf16.gmra.mrb[0].mxu0 %v41
  %v549 = vpop.f32.mrb[0].mxu0
  %v550 = vadd.f32 0.0, %v549
  %v551 = vpop.f32.mrb[0].mxu0
  %v552 = vadd.f32 0.0, %v551
  %v553 = vpop.f32.mrb[0].mxu0
  %v554 = vpop.f32.mrb[0].mxu0
  %555 = vdwg.mxu0
  %556 = vmatprep.subr.bf16.mxu0 %v513
  %557 = vmatpush1.bf16.msra.mxu0 %v510
  %558 = vmatprep.subr.bf16.mxu0 0
  %559 = vmatpush1.bf16.msra.mxu0 0
  %560 = vmatprep.subr.bf16.mxu0 0
  %561 = vmatpush1.bf16.msra.mxu0 0
  %562 = vmatprep.subr.bf16.mxu0 0
  %563 = vmatpush1.bf16.msra.mxu0 0
  %564 = vmatprep.subr.bf16.mxu0 0
  %565 = vmatpush1.bf16.msra.mxu0 0
  %566 = vmatprep.subr.bf16.mxu0 0
  %567 = vmatpush1.bf16.msra.mxu0 0
  %568 = vmatprep.subr.bf16.mxu0 0
  %569 = vmatpush1.bf16.msra.mxu0 0
  %570 = vmatprep.subr.bf16.mxu0 0
  %571 = vmatpush1.bf16.msra.mxu0 0
  %572 = vmatprep.subr.bf16.mxu0 0
  %573 = vmatpush1.bf16.msra.mxu0 0
  %574 = vmatprep.subr.bf16.mxu0 0
  %575 = vmatpush1.bf16.msra.mxu0 0
  %576 = vmatprep.subr.bf16.mxu0 0
  %577 = vmatpush1.bf16.msra.mxu0 0
  %578 = vmatprep.subr.bf16.mxu0 0
  %579 = vmatpush1.bf16.msra.mxu0 0
  %580 = vmatprep.subr.bf16.mxu0 0
  %581 = vmatpush1.bf16.msra.mxu0 0
  %582 = vmatprep.subr.bf16.mxu0 0
  %583 = vmatpush1.bf16.msra.mxu0 0
  %584 = vmatprep.subr.bf16.mxu0 0
  %585 = vmatpush1.bf16.msra.mxu0 0
  %586 = vmatprep.subr.bf16.mxu0 0
  %587 = vmatpush1.bf16.msra.mxu0 0
  %588 = vmatprep.mubr.bf16.mxu0 0
  %589 = vmatmul.mubr.bf16.gmra.mrb[0].mxu0 %v41
  %v590 = vpop.f32.mrb[0].mxu0
  %v591 = vadd.f32 0.0, %v590
  %v592 = vpop.f32.mrb[0].mxu0
  %v593 = vadd.f32 0.0, %v592
  %v594 = vpop.f32.mrb[0].mxu0
  %v595 = vpop.f32.mrb[0].mxu0
  %596 = vdwg.mxu0
  %vm597 = vcmp.gt.f32.partialorder %v550, 0.0
  %vm598 = vcmp.gt.f32.partialorder %v552, 0.0
  %vm599 = vcmp.gt.f32.partialorder %v591, 0.0
  %vm600 = vcmp.gt.f32.partialorder %v593, 0.0
  %v601 = vmul.f32 %v550, 0.01
  %v602 = vmul.f32 %v552, 0.01
  %v603 = vmul.f32 %v591, 0.01
  %v604 = vmul.f32 %v593, 0.01
  %v605 = vsel %vm597, %v550, %v601
  %v606 = vsel %vm598, %v552, %v602
  %v607 = vsel %vm599, %v591, %v603
  %v608 = vsel %vm600, %v593, %v604
  %v609 = vpack.c.bf16 %v605, %v605
  %v610 = vpack.c.bf16 %v606, %v606
  %v611 = vpack.c.bf16 %v607, %v607
  %v612 = vpack.c.bf16 %v608, %v608
  %v613 = vld [vmem:[%s2 + $0x100] sm:$0xf]
  %v614 = vld [vmem:[%s2 + $0x104] sm:$0xf]
  %v615 = vld [vmem:[%s2 + $0x108] sm:$0xf]
  %v616 = vld [vmem:[%s2 + $0x10c] sm:$0xf]
  %v617 = vld [vmem:[%s2 + $0x110] sm:$0xf]
  %v618 = vld [vmem:[%s2 + $0x114] sm:$0xf]
  %v619 = vld [vmem:[%s2 + $0x118] sm:$0xf]
  %v620 = vld [vmem:[%s2 + $0x11c] sm:$0xf]
  %v621 = vld [vmem:[%s2 + $0x120] sm:$0xf]
  %v622 = vld [vmem:[%s2 + $0x124] sm:$0xf]
  %v623 = vld [vmem:[%s2 + $0x128] sm:$0xf]
  %v624 = vld [vmem:[%s2 + $0x12c] sm:$0xf]
  %v625 = vld [vmem:[%s2 + $0x130] sm:$0xf]
  %v626 = vld [vmem:[%s2 + $0x134] sm:$0xf]
  %v627 = vld [vmem:[%s2 + $0x138] sm:$0xf]
  %v628 = vld [vmem:[%s2 + $0x13c] sm:$0xf]
  %v629 = vld [vmem:[%s2 + $0x140] sm:$0xf]
  %v630 = vld [vmem:[%s2 + $0x144] sm:$0xf]
  %v631 = vld [vmem:[%s2 + $0x148] sm:$0xf]
  %v632 = vld [vmem:[%s2 + $0x14c] sm:$0xf]
  %v633 = vld [vmem:[%s2 + $0x150] sm:$0xf]
  %v634 = vld [vmem:[%s2 + $0x154] sm:$0xf]
  %v635 = vld [vmem:[%s2 + $0x158] sm:$0xf]
  %v636 = vld [vmem:[%s2 + $0x15c] sm:$0xf]
  %v637 = vld [vmem:[%s2 + $0x160] sm:$0xf]
  %v638 = vld [vmem:[%s2 + $0x164] sm:$0xf]
  %v639 = vld [vmem:[%s2 + $0x168] sm:$0xf]
  %v640 = vld [vmem:[%s2 + $0x16c] sm:$0xf]
  %v641 = vld [vmem:[%s2 + $0x170] sm:$0xf]
  %v642 = vld [vmem:[%s2 + $0x174] sm:$0xf]
  %v643 = vld [vmem:[%s2 + $0x178] sm:$0xf]
  %v644 = vld [vmem:[%s2 + $0x17c] sm:$0xf]
  %v645 = vld [vmem:[%s2 + $0x180] sm:$0xf]
  %v646 = vld [vmem:[%s2 + $0x184] sm:$0xf]
  %v647 = vld [vmem:[%s2 + $0x188] sm:$0xf]
  %v648 = vld [vmem:[%s2 + $0x18c] sm:$0xf]
  %v649 = vld [vmem:[%s2 + $0x190] sm:$0xf]
  %v650 = vld [vmem:[%s2 + $0x194] sm:$0xf]
  %v651 = vld [vmem:[%s2 + $0x198] sm:$0xf]
  %v652 = vld [vmem:[%s2 + $0x19c] sm:$0xf]
  %v653 = vld [vmem:[%s2 + $0x1a0] sm:$0xf]
  %v654 = vld [vmem:[%s2 + $0x1a4] sm:$0xf]
  %v655 = vld [vmem:[%s2 + $0x1a8] sm:$0xf]
  %v656 = vld [vmem:[%s2 + $0x1ac] sm:$0xf]
  %v657 = vld [vmem:[%s2 + $0x1b0] sm:$0xf]
  %v658 = vld [vmem:[%s2 + $0x1b4] sm:$0xf]
  %v659 = vld [vmem:[%s2 + $0x1b8] sm:$0xf]
  %v660 = vld [vmem:[%s2 + $0x1bc] sm:$0xf]
  %v661 = vld [vmem:[%s2 + $0x1c0] sm:$0xf]
  %v662 = vld [vmem:[%s2 + $0x1c4] sm:$0xf]
  %v663 = vld [vmem:[%s2 + $0x1c8] sm:$0xf]
  %v664 = vld [vmem:[%s2 + $0x1cc] sm:$0xf]
  %v665 = vld [vmem:[%s2 + $0x1d0] sm:$0xf]
  %v666 = vld [vmem:[%s2 + $0x1d4] sm:$0xf]
  %v667 = vld [vmem:[%s2 + $0x1d8] sm:$0xf]
  %v668 = vld [vmem:[%s2 + $0x1dc] sm:$0xf]
  %v669 = vld [vmem:[%s2 + $0x1e0] sm:$0xf]
  %v670 = vld [vmem:[%s2 + $0x1e4] sm:$0xf]
  %v671 = vld [vmem:[%s2 + $0x1e8] sm:$0xf]
  %v672 = vld [vmem:[%s2 + $0x1ec] sm:$0xf]
  %v673 = vld [vmem:[%s2 + $0x1f0] sm:$0xf]
  %v674 = vld [vmem:[%s2 + $0x1f4] sm:$0xf]
  %v675 = vld [vmem:[%s2 + $0x1f8] sm:$0xf]
  %v676 = vld [vmem:[%s2 + $0x1fc] sm:$0xf]
  %v741 = vunpack.c.l.b16 %v613
  %v742 = vunpack.c.l.b16 %v614
  %v743 = vunpack.c.l.b16 %v615
  %v744 = vunpack.c.l.b16 %v616
  %v745 = vunpack.c.l.b16 %v617
  %v746 = vunpack.c.l.b16 %v618
  %v747 = vunpack.c.l.b16 %v619
  %v748 = vunpack.c.l.b16 %v620
  %v749 = vunpack.c.l.b16 %v621
  %v750 = vunpack.c.l.b16 %v622
  %v751 = vunpack.c.l.b16 %v623
  %v752 = vunpack.c.l.b16 %v624
  %v753 = vunpack.c.l.b16 %v625
  %v754 = vunpack.c.l.b16 %v626
  %v755 = vunpack.c.l.b16 %v627
  %v756 = vunpack.c.l.b16 %v628
  %v757 = vunpack.c.l.b16 %v629
  %v758 = vunpack.c.l.b16 %v630
  %v759 = vunpack.c.l.b16 %v631
  %v760 = vunpack.c.l.b16 %v632
  %v761 = vunpack.c.l.b16 %v633
  %v762 = vunpack.c.l.b16 %v634
  %v763 = vunpack.c.l.b16 %v635
  %v764 = vunpack.c.l.b16 %v636
  %v765 = vunpack.c.l.b16 %v637
  %v766 = vunpack.c.l.b16 %v638
  %v767 = vunpack.c.l.b16 %v639
  %v768 = vunpack.c.l.b16 %v640
  %v769 = vunpack.c.l.b16 %v641
  %v770 = vunpack.c.l.b16 %v642
  %v771 = vunpack.c.l.b16 %v643
  %v772 = vunpack.c.l.b16 %v644
  %v773 = vunpack.c.l.b16 %v645
  %v774 = vunpack.c.l.b16 %v646
  %v775 = vunpack.c.l.b16 %v647
  %v776 = vunpack.c.l.b16 %v648
  %v777 = vunpack.c.l.b16 %v649
  %v778 = vunpack.c.l.b16 %v650
  %v779 = vunpack.c.l.b16 %v651
  %v780 = vunpack.c.l.b16 %v652
  %v781 = vunpack.c.l.b16 %v653
  %v782 = vunpack.c.l.b16 %v654
  %v783 = vunpack.c.l.b16 %v655
  %v784 = vunpack.c.l.b16 %v656
  %v785 = vunpack.c.l.b16 %v657
  %v786 = vunpack.c.l.b16 %v658
  %v787 = vunpack.c.l.b16 %v659
  %v788 = vunpack.c.l.b16 %v660
  %v789 = vunpack.c.l.b16 %v661
  %v790 = vunpack.c.l.b16 %v662
  %v791 = vunpack.c.l.b16 %v663
  %v792 = vunpack.c.l.b16 %v664
  %v793 = vunpack.c.l.b16 %v665
  %v794 = vunpack.c.l.b16 %v666
  %v795 = vunpack.c.l.b16 %v667
  %v796 = vunpack.c.l.b16 %v668
  %v797 = vunpack.c.l.b16 %v669
  %v798 = vunpack.c.l.b16 %v670
  %v799 = vunpack.c.l.b16 %v671
  %v800 = vunpack.c.l.b16 %v672
  %v801 = vunpack.c.l.b16 %v673
  %v802 = vunpack.c.l.b16 %v674
  %v803 = vunpack.c.l.b16 %v675
  %v804 = vunpack.c.l.b16 %v676
  %v805 = vpack.c.b16 %v742, %v741
  %v806 = vpack.c.b16 %v744, %v743
  %v807 = vpack.c.b16 %v746, %v745
  %v808 = vpack.c.b16 %v748, %v747
  %v809 = vpack.c.b16 %v750, %v749
  %v810 = vpack.c.b16 %v752, %v751
  %v811 = vpack.c.b16 %v754, %v753
  %v812 = vpack.c.b16 %v756, %v755
  %v813 = vpack.c.b16 %v758, %v757
  %v814 = vpack.c.b16 %v760, %v759
  %v815 = vpack.c.b16 %v762, %v761
  %v816 = vpack.c.b16 %v764, %v763
  %v817 = vpack.c.b16 %v766, %v765
  %v818 = vpack.c.b16 %v768, %v767
  %v819 = vpack.c.b16 %v770, %v769
  %v820 = vpack.c.b16 %v772, %v771
  %v821 = vpack.c.b16 %v774, %v773
  %v822 = vpack.c.b16 %v776, %v775
  %v823 = vpack.c.b16 %v778, %v777
  %v824 = vpack.c.b16 %v780, %v779
  %v825 = vpack.c.b16 %v782, %v781
  %v826 = vpack.c.b16 %v784, %v783
  %v827 = vpack.c.b16 %v786, %v785
  %v828 = vpack.c.b16 %v788, %v787
  %v829 = vpack.c.b16 %v790, %v789
  %v830 = vpack.c.b16 %v792, %v791
  %v831 = vpack.c.b16 %v794, %v793
  %v832 = vpack.c.b16 %v796, %v795
  %v833 = vpack.c.b16 %v798, %v797
  %v834 = vpack.c.b16 %v800, %v799
  %v835 = vpack.c.b16 %v802, %v801
  %v836 = vpack.c.b16 %v804, %v803
  %869 = vmatprep.subr.bf16.mxu0 0
  %870 = vmatpush1.bf16.msra.mxu0 %v805
  %871 = vmatprep.subr.bf16.mxu0 0
  %872 = vmatpush1.bf16.msra.mxu0 %v806
  %873 = vmatprep.subr.bf16.mxu0 0
  %874 = vmatpush1.bf16.msra.mxu0 %v807
  %875 = vmatprep.subr.bf16.mxu0 0
  %876 = vmatpush1.bf16.msra.mxu0 %v808
  %877 = vmatprep.subr.bf16.mxu0 0
  %878 = vmatpush1.bf16.msra.mxu0 %v809
  %879 = vmatprep.subr.bf16.mxu0 0
  %880 = vmatpush1.bf16.msra.mxu0 %v810
  %881 = vmatprep.subr.bf16.mxu0 0
  %882 = vmatpush1.bf16.msra.mxu0 %v811
  %883 = vmatprep.subr.bf16.mxu0 0
  %884 = vmatpush1.bf16.msra.mxu0 %v812
  %885 = vmatprep.subr.bf16.mxu0 0
  %886 = vmatpush1.bf16.msra.mxu0 %v813
  %887 = vmatprep.subr.bf16.mxu0 0
  %888 = vmatpush1.bf16.msra.mxu0 %v814
  %889 = vmatprep.subr.bf16.mxu0 0
  %890 = vmatpush1.bf16.msra.mxu0 %v815
  %891 = vmatprep.subr.bf16.mxu0 0
  %892 = vmatpush1.bf16.msra.mxu0 %v816
  %893 = vmatprep.subr.bf16.mxu0 0
  %894 = vmatpush1.bf16.msra.mxu0 %v817
  %895 = vmatprep.subr.bf16.mxu0 0
  %896 = vmatpush1.bf16.msra.mxu0 %v818
  %897 = vmatprep.subr.bf16.mxu0 0
  %898 = vmatpush1.bf16.msra.mxu0 %v819
  %899 = vmatprep.subr.bf16.mxu0 0
  %900 = vmatpush1.bf16.msra.mxu0 %v820
  %901 = vmatprep.mubr.bf16.mxu0 %v610
  %902 = vmatmul.mubr.bf16.gmra.mrb[0].mxu0 %v609
  %v903 = vpop.f32.mrb[0].mxu0
  %v904 = vadd.f32 0.0, %v903
  %v905 = vpop.f32.mrb[0].mxu0
  %v906 = vpop.f32.mrb[0].mxu0
  %v907 = vpop.f32.mrb[0].mxu0
  %908 = vdwg.mxu0
  %909 = vmatprep.subr.bf16.mxu0 0
  %910 = vmatpush1.bf16.msra.mxu0 %v821
  %911 = vmatprep.subr.bf16.mxu0 0
  %912 = vmatpush1.bf16.msra.mxu0 %v822
  %913 = vmatprep.subr.bf16.mxu0 0
  %914 = vmatpush1.bf16.msra.mxu0 %v823
  %915 = vmatprep.subr.bf16.mxu0 0
  %916 = vmatpush1.bf16.msra.mxu0 %v824
  %917 = vmatprep.subr.bf16.mxu0 0
  %918 = vmatpush1.bf16.msra.mxu0 %v825
  %919 = vmatprep.subr.bf16.mxu0 0
  %920 = vmatpush1.bf16.msra.mxu0 %v826
  %921 = vmatprep.subr.bf16.mxu0 0
  %922 = vmatpush1.bf16.msra.mxu0 %v827
  %923 = vmatprep.subr.bf16.mxu0 0
  %924 = vmatpush1.bf16.msra.mxu0 %v828
  %925 = vmatprep.subr.bf16.mxu0 0
  %926 = vmatpush1.bf16.msra.mxu0 %v829
  %927 = vmatprep.subr.bf16.mxu0 0
  %928 = vmatpush1.bf16.msra.mxu0 %v830
  %929 = vmatprep.subr.bf16.mxu0 0
  %930 = vmatpush1.bf16.msra.mxu0 %v831
  %931 = vmatprep.subr.bf16.mxu0 0
  %932 = vmatpush1.bf16.msra.mxu0 %v832
  %933 = vmatprep.subr.bf16.mxu0 0
  %934 = vmatpush1.bf16.msra.mxu0 %v833
  %935 = vmatprep.subr.bf16.mxu0 0
  %936 = vmatpush1.bf16.msra.mxu0 %v834
  %937 = vmatprep.subr.bf16.mxu0 0
  %938 = vmatpush1.bf16.msra.mxu0 %v835
  %939 = vmatprep.subr.bf16.mxu0 0
  %940 = vmatpush1.bf16.msra.mxu0 %v836
  %941 = vmatprep.mubr.bf16.mxu0 %v612
  %942 = vmatmul.mubr.bf16.gmra.mrb[0].mxu0 %v611
  %v943 = vpop.f32.mrb[0].mxu0
  %v944 = vadd.f32 %v904, %v943
  %v945 = vpop.f32.mrb[0].mxu0
  %v946 = vpop.f32.mrb[0].mxu0
  %v947 = vpop.f32.mrb[0].mxu0
  %948 = vdwg.mxu0
  %v949 = vadd.f32 %v490, %v944
  %v950 = vld [vmem:[%s1 + $0x20] sm:$0xff]
  %v951 = vld [vmem:[%s1 + $0x28] sm:$0xff]
  %v954 = vunpack.c.l.b16 %v950
  %v955 = vunpack.c.h.b16 %v950
  %v956 = vunpack.c.l.b16 %v951
  %v957 = vunpack.c.h.b16 %v951
  %v958 = vpack.c.b16 %v954, %v954
  %v959 = vpack.c.b16 %v955, %v955
  %v960 = vpack.c.b16 %v956, %v956
  %v961 = vpack.c.b16 %v957, %v957
  %v963 = vsel %vm43, %v958, 0
  %v966 = vsel %vm43, %v959, 0
  %v969 = vsel %vm43, %v960, 0
  %v972 = vsel %vm43, %v961, 0
  %974 = vmatprep.subr.bf16.mxu0 %v966
  %975 = vmatpush1.bf16.msra.mxu0 %v963
  %976 = vmatprep.subr.bf16.mxu0 0
  %977 = vmatpush1.bf16.msra.mxu0 0
  %978 = vmatprep.subr.bf16.mxu0 0
  %979 = vmatpush1.bf16.msra.mxu0 0
  %980 = vmatprep.subr.bf16.mxu0 0
  %981 = vmatpush1.bf16.msra.mxu0 0
  %982 = vmatprep.subr.bf16.mxu0 0
  %983 = vmatpush1.bf16.msra.mxu0 0
  %984 = vmatprep.subr.bf16.mxu0 0
  %985 = vmatpush1.bf16.msra.mxu0 0
  %986 = vmatprep.subr.bf16.mxu0 0
  %987 = vmatpush1.bf16.msra.mxu0 0
  %988 = vmatprep.subr.bf16.mxu0 0
  %989 = vmatpush1.bf16.msra.mxu0 0
  %990 = vmatprep.subr.bf16.mxu0 0
  %991 = vmatpush1.bf16.msra.mxu0 0
  %992 = vmatprep.subr.bf16.mxu0 0
  %993 = vmatpush1.bf16.msra.mxu0 0
  %994 = vmatprep.subr.bf16.mxu0 0
  %995 = vmatpush1.bf16.msra.mxu0 0
  %996 = vmatprep.subr.bf16.mxu0 0
  %997 = vmatpush1.bf16.msra.mxu0 0
  %998 = vmatprep.subr.bf16.mxu0 0
  %999 = vmatpush1.bf16.msra.mxu0 0
  %1000 = vmatprep.subr.bf16.mxu0 0
  %1001 = vmatpush1.bf16.msra.mxu0 0
  %1002 = vmatprep.subr.bf16.mxu0 0
  %1003 = vmatpush1.bf16.msra.mxu0 0
  %1004 = vmatprep.subr.bf16.mxu0 0
  %1005 = vmatpush1.bf16.msra.mxu0 0
  %1006 = vmatprep.mubr.bf16.mxu0 0
  %1007 = vmatmul.mubr.bf16.gmra.mrb[0].mxu0 %v41
  %v1008 = vpop.f32.mrb[0].mxu0
  %v1009 = vadd.f32 0.0, %v1008
  %v1010 = vpop.f32.mrb[0].mxu0
  %v1011 = vadd.f32 0.0, %v1010
  %v1012 = vpop.f32.mrb[0].mxu0
  %v1013 = vpop.f32.mrb[0].mxu0
  %1014 = vdwg.mxu0
  %1015 = vmatprep.subr.bf16.mxu0 %v972
  %1016 = vmatpush1.bf16.msra.mxu0 %v969
  %1017 = vmatprep.subr.bf16.mxu0 0
  %1018 = vmatpush1.bf16.msra.mxu0 0
  %1019 = vmatprep.subr.bf16.mxu0 0
  %1020 = vmatpush1.bf16.msra.mxu0 0
  %1021 = vmatprep.subr.bf16.mxu0 0
  %1022 = vmatpush1.bf16.msra.mxu0 0
  %1023 = vmatprep.subr.bf16.mxu0 0
  %1024 = vmatpush1.bf16.msra.mxu0 0
  %1025 = vmatprep.subr.bf16.mxu0 0
  %1026 = vmatpush1.bf16.msra.mxu0 0
  %1027 = vmatprep.subr.bf16.mxu0 0
  %1028 = vmatpush1.bf16.msra.mxu0 0
  %1029 = vmatprep.subr.bf16.mxu0 0
  %1030 = vmatpush1.bf16.msra.mxu0 0
  %1031 = vmatprep.subr.bf16.mxu0 0
  %1032 = vmatpush1.bf16.msra.mxu0 0
  %1033 = vmatprep.subr.bf16.mxu0 0
  %1034 = vmatpush1.bf16.msra.mxu0 0
  %1035 = vmatprep.subr.bf16.mxu0 0
  %1036 = vmatpush1.bf16.msra.mxu0 0
  %1037 = vmatprep.subr.bf16.mxu0 0
  %1038 = vmatpush1.bf16.msra.mxu0 0
  %1039 = vmatprep.subr.bf16.mxu0 0
  %1040 = vmatpush1.bf16.msra.mxu0 0
  %1041 = vmatprep.subr.bf16.mxu0 0
  %1042 = vmatpush1.bf16.msra.mxu0 0
  %1043 = vmatprep.subr.bf16.mxu0 0
  %1044 = vmatpush1.bf16.msra.mxu0 0
  %1045 = vmatprep.subr.bf16.mxu0 0
  %1046 = vmatpush1.bf16.msra.mxu0 0
  %1047 = vmatprep.mubr.bf16.mxu0 0
  %1048 = vmatmul.mubr.bf16.gmra.mrb[0].mxu0 %v41
  %v1049 = vpop.f32.mrb[0].mxu0
  %v1050 = vadd.f32 0.0, %v1049
  %v1051 = vpop.f32.mrb[0].mxu0
  %v1052 = vadd.f32 0.0, %v1051
  %v1053 = vpop.f32.mrb[0].mxu0
  %v1054 = vpop.f32.mrb[0].mxu0
  %1055 = vdwg.mxu0
  %vm1056 = vcmp.gt.f32.partialorder %v1009, 0.0
  %vm1057 = vcmp.gt.f32.partialorder %v1011, 0.0
  %vm1058 = vcmp.gt.f32.partialorder %v1050, 0.0
  %vm1059 = vcmp.gt.f32.partialorder %v1052, 0.0
  %v1060 = vmul.f32 %v1009, 0.01
  %v1061 = vmul.f32 %v1011, 0.01
  %v1062 = vmul.f32 %v1050, 0.01
  %v1063 = vmul.f32 %v1052, 0.01
  %v1064 = vsel %vm1056, %v1009, %v1060
  %v1065 = vsel %vm1057, %v1011, %v1061
  %v1066 = vsel %vm1058, %v1050, %v1062
  %v1067 = vsel %vm1059, %v1052, %v1063
  %v1068 = vpack.c.bf16 %v1064, %v1064
  %v1069 = vpack.c.bf16 %v1065, %v1065
  %v1070 = vpack.c.bf16 %v1066, %v1066
  %v1071 = vpack.c.bf16 %v1067, %v1067
  %v1072 = vld [vmem:[%s2 + $0x200] sm:$0xf]
  %v1073 = vld [vmem:[%s2 + $0x204] sm:$0xf]
  %v1074 = vld [vmem:[%s2 + $0x208] sm:$0xf]
  %v1075 = vld [vmem:[%s2 + $0x20c] sm:$0xf]
  %v1076 = vld [vmem:[%s2 + $0x210] sm:$0xf]
  %v1077 = vld [vmem:[%s2 + $0x214] sm:$0xf]
  %v1078 = vld [vmem:[%s2 + $0x218] sm:$0xf]
  %v1079 = vld [vmem:[%s2 + $0x21c] sm:$0xf]
  %v1080 = vld [vmem:[%s2 + $0x220] sm:$0xf]
  %v1081 = vld [vmem:[%s2 + $0x224] sm:$0xf]
  %v1082 = vld [vmem:[%s2 + $0x228] sm:$0xf]
  %v1083 = vld [vmem:[%s2 + $0x22c] sm:$0xf]
  %v1084 = vld [vmem:[%s2 + $0x230] sm:$0xf]
  %v1085 = vld [vmem:[%s2 + $0x234] sm:$0xf]
  %v1086 = vld [vmem:[%s2 + $0x238] sm:$0xf]
  %v1087 = vld [vmem:[%s2 + $0x23c] sm:$0xf]
  %v1088 = vld [vmem:[%s2 + $0x240] sm:$0xf]
  %v1089 = vld [vmem:[%s2 + $0x244] sm:$0xf]
  %v1090 = vld [vmem:[%s2 + $0x248] sm:$0xf]
  %v1091 = vld [vmem:[%s2 + $0x24c] sm:$0xf]
  %v1092 = vld [vmem:[%s2 + $0x250] sm:$0xf]
  %v1093 = vld [vmem:[%s2 + $0x254] sm:$0xf]
  %v1094 = vld [vmem:[%s2 + $0x258] sm:$0xf]
  %v1095 = vld [vmem:[%s2 + $0x25c] sm:$0xf]
  %v1096 = vld [vmem:[%s2 + $0x260] sm:$0xf]
  %v1097 = vld [vmem:[%s2 + $0x264] sm:$0xf]
  %v1098 = vld [vmem:[%s2 + $0x268] sm:$0xf]
  %v1099 = vld [vmem:[%s2 + $0x26c] sm:$0xf]
  %v1100 = vld [vmem:[%s2 + $0x270] sm:$0xf]
  %v1101 = vld [vmem:[%s2 + $0x274] sm:$0xf]
  %v1102 = vld [vmem:[%s2 + $0x278] sm:$0xf]
  %v1103 = vld [vmem:[%s2 + $0x27c] sm:$0xf]
  %v1104 = vld [vmem:[%s2 + $0x280] sm:$0xf]
  %v1105 = vld [vmem:[%s2 + $0x284] sm:$0xf]
  %v1106 = vld [vmem:[%s2 + $0x288] sm:$0xf]
  %v1107 = vld [vmem:[%s2 + $0x28c] sm:$0xf]
  %v1108 = vld [vmem:[%s2 + $0x290] sm:$0xf]
  %v1109 = vld [vmem:[%s2 + $0x294] sm:$0xf]
  %v1110 = vld [vmem:[%s2 + $0x298] sm:$0xf]
  %v1111 = vld [vmem:[%s2 + $0x29c] sm:$0xf]
  %v1112 = vld [vmem:[%s2 + $0x2a0] sm:$0xf]
  %v1113 = vld [vmem:[%s2 + $0x2a4] sm:$0xf]
  %v1114 = vld [vmem:[%s2 + $0x2a8] sm:$0xf]
  %v1115 = vld [vmem:[%s2 + $0x2ac] sm:$0xf]
  %v1116 = vld [vmem:[%s2 + $0x2b0] sm:$0xf]
  %v1117 = vld [vmem:[%s2 + $0x2b4] sm:$0xf]
  %v1118 = vld [vmem:[%s2 + $0x2b8] sm:$0xf]
  %v1119 = vld [vmem:[%s2 + $0x2bc] sm:$0xf]
  %v1120 = vld [vmem:[%s2 + $0x2c0] sm:$0xf]
  %v1121 = vld [vmem:[%s2 + $0x2c4] sm:$0xf]
  %v1122 = vld [vmem:[%s2 + $0x2c8] sm:$0xf]
  %v1123 = vld [vmem:[%s2 + $0x2cc] sm:$0xf]
  %v1124 = vld [vmem:[%s2 + $0x2d0] sm:$0xf]
  %v1125 = vld [vmem:[%s2 + $0x2d4] sm:$0xf]
  %v1126 = vld [vmem:[%s2 + $0x2d8] sm:$0xf]
  %v1127 = vld [vmem:[%s2 + $0x2dc] sm:$0xf]
  %v1128 = vld [vmem:[%s2 + $0x2e0] sm:$0xf]
  %v1129 = vld [vmem:[%s2 + $0x2e4] sm:$0xf]
  %v1130 = vld [vmem:[%s2 + $0x2e8] sm:$0xf]
  %v1131 = vld [vmem:[%s2 + $0x2ec] sm:$0xf]
  %v1132 = vld [vmem:[%s2 + $0x2f0] sm:$0xf]
  %v1133 = vld [vmem:[%s2 + $0x2f4] sm:$0xf]
  %v1134 = vld [vmem:[%s2 + $0x2f8] sm:$0xf]
  %v1135 = vld [vmem:[%s2 + $0x2fc] sm:$0xf]
  %v1200 = vunpack.c.l.b16 %v1072
  %v1201 = vunpack.c.l.b16 %v1073
  %v1202 = vunpack.c.l.b16 %v1074
  %v1203 = vunpack.c.l.b16 %v1075
  %v1204 = vunpack.c.l.b16 %v1076
  %v1205 = vunpack.c.l.b16 %v1077
  %v1206 = vunpack.c.l.b16 %v1078
  %v1207 = vunpack.c.l.b16 %v1079
  %v1208 = vunpack.c.l.b16 %v1080
  %v1209 = vunpack.c.l.b16 %v1081
  %v1210 = vunpack.c.l.b16 %v1082
  %v1211 = vunpack.c.l.b16 %v1083
  %v1212 = vunpack.c.l.b16 %v1084
  %v1213 = vunpack.c.l.b16 %v1085
  %v1214 = vunpack.c.l.b16 %v1086
  %v1215 = vunpack.c.l.b16 %v1087
  %v1216 = vunpack.c.l.b16 %v1088
  %v1217 = vunpack.c.l.b16 %v1089
  %v1218 = vunpack.c.l.b16 %v1090
  %v1219 = vunpack.c.l.b16 %v1091
  %v1220 = vunpack.c.l.b16 %v1092
  %v1221 = vunpack.c.l.b16 %v1093
  %v1222 = vunpack.c.l.b16 %v1094
  %v1223 = vunpack.c.l.b16 %v1095
  %v1224 = vunpack.c.l.b16 %v1096
  %v1225 = vunpack.c.l.b16 %v1097
  %v1226 = vunpack.c.l.b16 %v1098
  %v1227 = vunpack.c.l.b16 %v1099
  %v1228 = vunpack.c.l.b16 %v1100
  %v1229 = vunpack.c.l.b16 %v1101
  %v1230 = vunpack.c.l.b16 %v1102
  %v1231 = vunpack.c.l.b16 %v1103
  %v1232 = vunpack.c.l.b16 %v1104
  %v1233 = vunpack.c.l.b16 %v1105
  %v1234 = vunpack.c.l.b16 %v1106
  %v1235 = vunpack.c.l.b16 %v1107
  %v1236 = vunpack.c.l.b16 %v1108
  %v1237 = vunpack.c.l.b16 %v1109
  %v1238 = vunpack.c.l.b16 %v1110
  %v1239 = vunpack.c.l.b16 %v1111
  %v1240 = vunpack.c.l.b16 %v1112
  %v1241 = vunpack.c.l.b16 %v1113
  %v1242 = vunpack.c.l.b16 %v1114
  %v1243 = vunpack.c.l.b16 %v1115
  %v1244 = vunpack.c.l.b16 %v1116
  %v1245 = vunpack.c.l.b16 %v1117
  %v1246 = vunpack.c.l.b16 %v1118
  %v1247 = vunpack.c.l.b16 %v1119
  %v1248 = vunpack.c.l.b16 %v1120
  %v1249 = vunpack.c.l.b16 %v1121
  %v1250 = vunpack.c.l.b16 %v1122
  %v1251 = vunpack.c.l.b16 %v1123
  %v1252 = vunpack.c.l.b16 %v1124
  %v1253 = vunpack.c.l.b16 %v1125
  %v1254 = vunpack.c.l.b16 %v1126
  %v1255 = vunpack.c.l.b16 %v1127
  %v1256 = vunpack.c.l.b16 %v1128
  %v1257 = vunpack.c.l.b16 %v1129
  %v1258 = vunpack.c.l.b16 %v1130
  %v1259 = vunpack.c.l.b16 %v1131
  %v1260 = vunpack.c.l.b16 %v1132
  %v1261 = vunpack.c.l.b16 %v1133
  %v1262 = vunpack.c.l.b16 %v1134
  %v1263 = vunpack.c.l.b16 %v1135
  %v1264 = vpack.c.b16 %v1201, %v1200
  %v1265 = vpack.c.b16 %v1203, %v1202
  %v1266 = vpack.c.b16 %v1205, %v1204
  %v1267 = vpack.c.b16 %v1207, %v1206
  %v1268 = vpack.c.b16 %v1209, %v1208
  %v1269 = vpack.c.b16 %v1211, %v1210
  %v1270 = vpack.c.b16 %v1213, %v1212
  %v1271 = vpack.c.b16 %v1215, %v1214
  %v1272 = vpack.c.b16 %v1217, %v1216
  %v1273 = vpack.c.b16 %v1219, %v1218
  %v1274 = vpack.c.b16 %v1221, %v1220
  %v1275 = vpack.c.b16 %v1223, %v1222
  %v1276 = vpack.c.b16 %v1225, %v1224
  %v1277 = vpack.c.b16 %v1227, %v1226
  %v1278 = vpack.c.b16 %v1229, %v1228
  %v1279 = vpack.c.b16 %v1231, %v1230
  %v1280 = vpack.c.b16 %v1233, %v1232
  %v1281 = vpack.c.b16 %v1235, %v1234
  %v1282 = vpack.c.b16 %v1237, %v1236
  %v1283 = vpack.c.b16 %v1239, %v1238
  %v1284 = vpack.c.b16 %v1241, %v1240
  %v1285 = vpack.c.b16 %v1243, %v1242
  %v1286 = vpack.c.b16 %v1245, %v1244
  %v1287 = vpack.c.b16 %v1247, %v1246
  %v1288 = vpack.c.b16 %v1249, %v1248
  %v1289 = vpack.c.b16 %v1251, %v1250
  %v1290 = vpack.c.b16 %v1253, %v1252
  %v1291 = vpack.c.b16 %v1255, %v1254
  %v1292 = vpack.c.b16 %v1257, %v1256
  %v1293 = vpack.c.b16 %v1259, %v1258
  %v1294 = vpack.c.b16 %v1261, %v1260
  %v1295 = vpack.c.b16 %v1263, %v1262
  %1328 = vmatprep.subr.bf16.mxu0 0
  %1329 = vmatpush1.bf16.msra.mxu0 %v1264
  %1330 = vmatprep.subr.bf16.mxu0 0
  %1331 = vmatpush1.bf16.msra.mxu0 %v1265
  %1332 = vmatprep.subr.bf16.mxu0 0
  %1333 = vmatpush1.bf16.msra.mxu0 %v1266
  %1334 = vmatprep.subr.bf16.mxu0 0
  %1335 = vmatpush1.bf16.msra.mxu0 %v1267
  %1336 = vmatprep.subr.bf16.mxu0 0
  %1337 = vmatpush1.bf16.msra.mxu0 %v1268
  %1338 = vmatprep.subr.bf16.mxu0 0
  %1339 = vmatpush1.bf16.msra.mxu0 %v1269
  %1340 = vmatprep.subr.bf16.mxu0 0
  %1341 = vmatpush1.bf16.msra.mxu0 %v1270
  %1342 = vmatprep.subr.bf16.mxu0 0
  %1343 = vmatpush1.bf16.msra.mxu0 %v1271
  %1344 = vmatprep.subr.bf16.mxu0 0
  %1345 = vmatpush1.bf16.msra.mxu0 %v1272
  %1346 = vmatprep.subr.bf16.mxu0 0
  %1347 = vmatpush1.bf16.msra.mxu0 %v1273
  %1348 = vmatprep.subr.bf16.mxu0 0
  %1349 = vmatpush1.bf16.msra.mxu0 %v1274
  %1350 = vmatprep.subr.bf16.mxu0 0
  %1351 = vmatpush1.bf16.msra.mxu0 %v1275
  %1352 = vmatprep.subr.bf16.mxu0 0
  %1353 = vmatpush1.bf16.msra.mxu0 %v1276
  %1354 = vmatprep.subr.bf16.mxu0 0
  %1355 = vmatpush1.bf16.msra.mxu0 %v1277
  %1356 = vmatprep.subr.bf16.mxu0 0
  %1357 = vmatpush1.bf16.msra.mxu0 %v1278
  %1358 = vmatprep.subr.bf16.mxu0 0
  %1359 = vmatpush1.bf16.msra.mxu0 %v1279
  %1360 = vmatprep.mubr.bf16.mxu0 %v1069
  %1361 = vmatmul.mubr.bf16.gmra.mrb[0].mxu0 %v1068
  %v1362 = vpop.f32.mrb[0].mxu0
  %v1363 = vadd.f32 0.0, %v1362
  %v1364 = vpop.f32.mrb[0].mxu0
  %v1365 = vpop.f32.mrb[0].mxu0
  %v1366 = vpop.f32.mrb[0].mxu0
  %1367 = vdwg.mxu0
  %1368 = vmatprep.subr.bf16.mxu0 0
  %1369 = vmatpush1.bf16.msra.mxu0 %v1280
  %1370 = vmatprep.subr.bf16.mxu0 0
  %1371 = vmatpush1.bf16.msra.mxu0 %v1281
  %1372 = vmatprep.subr.bf16.mxu0 0
  %1373 = vmatpush1.bf16.msra.mxu0 %v1282
  %1374 = vmatprep.subr.bf16.mxu0 0
  %1375 = vmatpush1.bf16.msra.mxu0 %v1283
  %1376 = vmatprep.subr.bf16.mxu0 0
  %1377 = vmatpush1.bf16.msra.mxu0 %v1284
  %1378 = vmatprep.subr.bf16.mxu0 0
  %1379 = vmatpush1.bf16.msra.mxu0 %v1285
  %1380 = vmatprep.subr.bf16.mxu0 0
  %1381 = vmatpush1.bf16.msra.mxu0 %v1286
  %1382 = vmatprep.subr.bf16.mxu0 0
  %1383 = vmatpush1.bf16.msra.mxu0 %v1287
  %1384 = vmatprep.subr.bf16.mxu0 0
  %1385 = vmatpush1.bf16.msra.mxu0 %v1288
  %1386 = vmatprep.subr.bf16.mxu0 0
  %1387 = vmatpush1.bf16.msra.mxu0 %v1289
  %1388 = vmatprep.subr.bf16.mxu0 0
  %1389 = vmatpush1.bf16.msra.mxu0 %v1290
  %1390 = vmatprep.subr.bf16.mxu0 0
  %1391 = vmatpush1.bf16.msra.mxu0 %v1291
  %1392 = vmatprep.subr.bf16.mxu0 0
  %1393 = vmatpush1.bf16.msra.mxu0 %v1292
  %1394 = vmatprep.subr.bf16.mxu0 0
  %1395 = vmatpush1.bf16.msra.mxu0 %v1293
  %1396 = vmatprep.subr.bf16.mxu0 0
  %1397 = vmatpush1.bf16.msra.mxu0 %v1294
  %1398 = vmatprep.subr.bf16.mxu0 0
  %1399 = vmatpush1.bf16.msra.mxu0 %v1295
  %1400 = vmatprep.mubr.bf16.mxu0 %v1071
  %1401 = vmatmul.mubr.bf16.gmra.mrb[0].mxu0 %v1070
  %v1402 = vpop.f32.mrb[0].mxu0
  %v1403 = vadd.f32 %v1363, %v1402
  %v1404 = vpop.f32.mrb[0].mxu0
  %v1405 = vpop.f32.mrb[0].mxu0
  %v1406 = vpop.f32.mrb[0].mxu0
  %1407 = vdwg.mxu0
  %v1408 = vadd.f32 %v949, %v1403
  %v1409 = vld [vmem:[%s1 + $0x30] sm:$0xf]
  %v1411 = vsel %vm43, %v1409, 0
  %1413 = vmatprep.subr.bf16.mxu0 0
  %1414 = vmatpush1.bf16.msra.mxu0 %v1411
  %1415 = vmatprep.subr.bf16.mxu0 0
  %1416 = vmatpush1.bf16.msra.mxu0 0
  %1417 = vmatprep.subr.bf16.mxu0 0
  %1418 = vmatpush1.bf16.msra.mxu0 0
  %1419 = vmatprep.subr.bf16.mxu0 0
  %1420 = vmatpush1.bf16.msra.mxu0 0
  %1421 = vmatprep.subr.bf16.mxu0 0
  %1422 = vmatpush1.bf16.msra.mxu0 0
  %1423 = vmatprep.subr.bf16.mxu0 0
  %1424 = vmatpush1.bf16.msra.mxu0 0
  %1425 = vmatprep.subr.bf16.mxu0 0
  %1426 = vmatpush1.bf16.msra.mxu0 0
  %1427 = vmatprep.subr.bf16.mxu0 0
  %1428 = vmatpush1.bf16.msra.mxu0 0
  %1429 = vmatprep.subr.bf16.mxu0 0
  %1430 = vmatpush1.bf16.msra.mxu0 0
  %1431 = vmatprep.subr.bf16.mxu0 0
  %1432 = vmatpush1.bf16.msra.mxu0 0
  %1433 = vmatprep.subr.bf16.mxu0 0
  %1434 = vmatpush1.bf16.msra.mxu0 0
  %1435 = vmatprep.subr.bf16.mxu0 0
  %1436 = vmatpush1.bf16.msra.mxu0 0
  %1437 = vmatprep.subr.bf16.mxu0 0
  %1438 = vmatpush1.bf16.msra.mxu0 0
  %1439 = vmatprep.subr.bf16.mxu0 0
  %1440 = vmatpush1.bf16.msra.mxu0 0
  %1441 = vmatprep.subr.bf16.mxu0 0
  %1442 = vmatpush1.bf16.msra.mxu0 0
  %1443 = vmatprep.subr.bf16.mxu0 0
  %1444 = vmatpush1.bf16.msra.mxu0 0
  %1445 = vmatprep.mubr.bf16.mxu0 0
  %1446 = vmatmul.mubr.bf16.gmra.mrb[0].mxu0 %v41
  %v1447 = vpop.f32.mrb[0].mxu0
  %v1448 = vadd.f32 0.0, %v1447
  %v1449 = vpop.f32.mrb[0].mxu0
  %v1450 = vpop.f32.mrb[0].mxu0
  %v1451 = vpop.f32.mrb[0].mxu0
  %1452 = vdwg.mxu0
  %vm1453 = vcmp.gt.f32.partialorder %v1448, 0.0
  %v1454 = vmul.f32 %v1448, 0.01
  %v1455 = vsel %vm1453, %v1448, %v1454
  %v1456 = vpack.c.bf16 %v1455, %v1455
  %v1457 = vld [vmem:[%s2 + $0x300] sm:$0xf]
  %v1458 = vld [vmem:[%s2 + $0x304] sm:$0xf]
  %v1459 = vld [vmem:[%s2 + $0x308] sm:$0xf]
  %v1460 = vld [vmem:[%s2 + $0x30c] sm:$0xf]
  %v1461 = vld [vmem:[%s2 + $0x310] sm:$0xf]
  %v1462 = vld [vmem:[%s2 + $0x314] sm:$0xf]
  %v1463 = vld [vmem:[%s2 + $0x318] sm:$0xf]
  %v1464 = vld [vmem:[%s2 + $0x31c] sm:$0xf]
  %v1465 = vld [vmem:[%s2 + $0x320] sm:$0xf]
  %v1466 = vld [vmem:[%s2 + $0x324] sm:$0xf]
  %v1467 = vld [vmem:[%s2 + $0x328] sm:$0xf]
  %v1468 = vld [vmem:[%s2 + $0x32c] sm:$0xf]
  %v1469 = vld [vmem:[%s2 + $0x330] sm:$0xf]
  %v1470 = vld [vmem:[%s2 + $0x334] sm:$0xf]
  %v1471 = vld [vmem:[%s2 + $0x338] sm:$0xf]
  %v1472 = vld [vmem:[%s2 + $0x33c] sm:$0xf]
  %v1489 = vunpack.c.l.b16 %v1457
  %v1490 = vunpack.c.l.b16 %v1458
  %v1491 = vunpack.c.l.b16 %v1459
  %v1492 = vunpack.c.l.b16 %v1460
  %v1493 = vunpack.c.l.b16 %v1461
  %v1494 = vunpack.c.l.b16 %v1462
  %v1495 = vunpack.c.l.b16 %v1463
  %v1496 = vunpack.c.l.b16 %v1464
  %v1497 = vunpack.c.l.b16 %v1465
  %v1498 = vunpack.c.l.b16 %v1466
  %v1499 = vunpack.c.l.b16 %v1467
  %v1500 = vunpack.c.l.b16 %v1468
  %v1501 = vunpack.c.l.b16 %v1469
  %v1502 = vunpack.c.l.b16 %v1470
  %v1503 = vunpack.c.l.b16 %v1471
  %v1504 = vunpack.c.l.b16 %v1472
  %v1505 = vpack.c.b16 %v1490, %v1489
  %v1506 = vpack.c.b16 %v1492, %v1491
  %v1507 = vpack.c.b16 %v1494, %v1493
  %v1508 = vpack.c.b16 %v1496, %v1495
  %v1509 = vpack.c.b16 %v1498, %v1497
  %v1510 = vpack.c.b16 %v1500, %v1499
  %v1511 = vpack.c.b16 %v1502, %v1501
  %v1512 = vpack.c.b16 %v1504, %v1503
  %1521 = vmatprep.subr.bf16.mxu0 0
  %1522 = vmatpush1.bf16.msra.mxu0 %v1505
  %1523 = vmatprep.subr.bf16.mxu0 0
  %1524 = vmatpush1.bf16.msra.mxu0 %v1506
  %1525 = vmatprep.subr.bf16.mxu0 0
  %1526 = vmatpush1.bf16.msra.mxu0 %v1507
  %1527 = vmatprep.subr.bf16.mxu0 0
  %1528 = vmatpush1.bf16.msra.mxu0 %v1508
  %1529 = vmatprep.subr.bf16.mxu0 0
  %1530 = vmatpush1.bf16.msra.mxu0 %v1509
  %1531 = vmatprep.subr.bf16.mxu0 0
  %1532 = vmatpush1.bf16.msra.mxu0 %v1510
  %1533 = vmatprep.subr.bf16.mxu0 0
  %1534 = vmatpush1.bf16.msra.mxu0 %v1511
  %1535 = vmatprep.subr.bf16.mxu0 0
  %1536 = vmatpush1.bf16.msra.mxu0 %v1512
  %1537 = vmatprep.subr.bf16.mxu0 0
  %1538 = vmatpush1.bf16.msra.mxu0 0
  %1539 = vmatprep.subr.bf16.mxu0 0
  %1540 = vmatpush1.bf16.msra.mxu0 0
  %1541 = vmatprep.subr.bf16.mxu0 0
  %1542 = vmatpush1.bf16.msra.mxu0 0
  %1543 = vmatprep.subr.bf16.mxu0 0
  %1544 = vmatpush1.bf16.msra.mxu0 0
  %1545 = vmatprep.subr.bf16.mxu0 0
  %1546 = vmatpush1.bf16.msra.mxu0 0
  %1547 = vmatprep.subr.bf16.mxu0 0
  %1548 = vmatpush1.bf16.msra.mxu0 0
  %1549 = vmatprep.subr.bf16.mxu0 0
  %1550 = vmatpush1.bf16.msra.mxu0 0
  %1551 = vmatprep.subr.bf16.mxu0 0
  %1552 = vmatpush1.bf16.msra.mxu0 0
  %1553 = vmatprep.mubr.bf16.mxu0 0
  %1554 = vmatmul.mubr.bf16.gmra.mrb[0].mxu0 %v1456
  %v1555 = vpop.f32.mrb[0].mxu0
  %v1556 = vadd.f32 0.0, %v1555
  %v1557 = vpop.f32.mrb[0].mxu0
  %v1558 = vpop.f32.mrb[0].mxu0
  %v1559 = vpop.f32.mrb[0].mxu0
  %1560 = vdwg.mxu0
  %v1561 = vadd.f32 %v1408, %v1556
  %1562 = vst [vmem:[%s4] sm:$0xff] %v1561
  // Predicated region
  $region18: #{nonlinear_multibin.1} parent=0 // pred_check
    _
  $region19: #{nonlinear_multibin.1} parent=0 // pred_check_branch
    %1564 = sbr.rel (0) target = $region21
  $region20: #{nonlinear_multibin.1} parent=0 // pred_region
    _
  $region21: #{nonlinear_multibin.1} parent=0 // pred_fallthru
    _
  // Predicated region
  $region22: #{nonlinear_multibin.1} parent=0 // pred_check
    _
  $region23: #{nonlinear_multibin.1} parent=0 // pred_check_branch
    %1566 = sbr.rel (0) target = $region25
  $region24: #{nonlinear_multibin.1} parent=0 // pred_region
    _
  $region25: #{nonlinear_multibin.1} parent=0 // pred_fallthru
    _

</llo_original>
